<compile_context>
chip_gen: v7x
topology: tpu7x:2x2x1
jax: 0.10.0
libtpu: 0.0.40
codegen_flags: <defaults>
</compile_context>

<pallas_src>
import functools

import jax
import jax.numpy as jnp
from jax.experimental import pallas as pl
from jax.experimental.pallas import tpu as pltpu

BUCKET_NUMBER = 100       # fixed by arange(0, 1400, 7).reshape(100, 2)
KP = 128                  # bucket axis padded to a full lane tile
NEG_SLOPE = 0.01          # nn.LeakyReLU default


def reward_embedding_kernel(x_ref, wret_ref, wres_ref, meta_ref, o_ref, *, d):
    # x_ref    : (TB*D, 2)      input rewards for TB (n, c) groups, flattened
    # wret_ref : (2, KP)        W_ret^T, zero-padded on the bucket axis
    # wres_ref : (KP, KP)       W_res^T, zero-padded on both bucket axes
    # meta_ref : (KP, n_embd)   Meta_emb, zero-padded rows beyond K
    # o_ref    : (TB*D, n_embd) output slab
    r = x_ref.shape[0]
    tb = r // d

    # Linear(2, K) as two VPU broadcast MACs (no MXU push for a K=2 contraction).
    x0 = x_ref[:, 0:1]                                     # (R, 1)
    x1 = x_ref[:, 1:2]                                     # (R, 1)
    s = x0 * wret_ref[0:1, :] + x1 * wret_ref[1:2, :]      # (R, KP)

    # LeakyReLU
    s = jnp.where(s > 0, s, NEG_SLOPE * s)

    # Residual: s = s + s @ W_res^T   (full 128-wide MXU tile)
    s = s + jnp.dot(s, wres_ref[...], preferred_element_type=jnp.float32)

    # Softmax over dim=2 of the original (N, C, D, K) tensor == the D axis.
    # (R, KP) -> (TB, D, KP) is a sublane-aligned split (D = 8 here).
    s3 = s.reshape(tb, d, KP)
    m = jnp.max(s3, axis=1, keepdims=True)                 # (TB, 1, KP)
    e = jnp.exp(s3 - m)
    denom = jnp.sum(e, axis=1, keepdims=True)              # (TB, 1, KP)
    p = e * pl.reciprocal(denom, approx=True)              # (TB, D, KP)

    # einsum('ncdk,km->ncdm'): (R, KP) @ (KP, n_embd); padded meta rows are 0.
    o_ref[...] = jnp.dot(p.reshape(r, KP), meta_ref[...],
                         preferred_element_type=jnp.float32)


def _choose_tb(nc, d, target_rows=1024):
    """How many (n, c) groups per grid step; keeps blocks (8,128)-legal."""
    tb_cap = max(1, target_rows // max(d, 1))
    if nc >= 2:
        # Keep >= 2 grid steps when possible so ("parallel",) can shard the
        # grid across the two TensorCores on v7x.
        tb_cap = min(tb_cap, max(1, nc // 2))
    tb_cap = max(1, min(tb_cap, nc))
    for tb in range(tb_cap, 0, -1):
        if nc % tb == 0 and (tb * d) % 8 == 0:
            return tb
    return nc    # full-extent block: always a legal block shape


def reward_embedding_forward(x, params):
    """x: (N, C, D, 2) float32 -> (N, C, D, n_embd) float32."""
    N, C, D, two = x.shape
    assert two == 2
    K = BUCKET_NUMBER
    n_embd = params["w_bucket_t"].shape[1]

    # Grid-invariant Meta_emb, hoisted to plain XLA; zero-pad the bucket axis.
    bucket_value = jnp.arange(0, 1400, 7, dtype=jnp.float32).reshape(K, 2)
    meta = bucket_value @ params["w_bucket_t"] + params["b_bucket"]      # (K, n_embd)
    meta_p = jnp.zeros((KP, n_embd), jnp.float32).at[:K, :].set(meta)

    # Zero-pad the bucket axis of the weights to 128 lanes.
    wret_p = jnp.zeros((2, KP), jnp.float32).at[:, :K].set(params["w_ret_t"])
    wres_p = jnp.zeros((KP, KP), jnp.float32).at[:K, :K].set(params["w_res_t"])

    NC = N * C
    TB = _choose_tb(NC, D)
    R = TB * D
    grid = (NC // TB,)
    x_flat = x.reshape(NC * D, 2)

    kernel = functools.partial(reward_embedding_kernel, d=D)

    grid_spec = pltpu.PrefetchScalarGridSpec(
        num_scalar_prefetch=0,
        grid=grid,
        in_specs=[
            pl.BlockSpec((R, 2), lambda i: (i, 0)),           # x slab
            pl.BlockSpec((2, KP), lambda i: (0, 0)),          # W_ret^T (padded)
            pl.BlockSpec((KP, KP), lambda i: (0, 0)),         # W_res^T (padded)
            pl.BlockSpec((KP, n_embd), lambda i: (0, 0)),     # Meta_emb (padded)
        ],
        out_specs=pl.BlockSpec((R, n_embd), lambda i: (i, 0)),
    )

    out_flat = pl.pallas_call(
        kernel,
        out_shape=jax.ShapeDtypeStruct((NC * D, n_embd), jnp.float32),
        grid_spec=grid_spec,
        compiler_params=pltpu.CompilerParams(
            dimension_semantics=("parallel",)),
    )(x_flat, wret_p, wres_p, meta_p)

    return out_flat.reshape(N, C, D, n_embd)


def reward_embedding_reference(x, params):
    """Plain-JAX reference mirroring the PyTorch forward exactly (unpadded)."""
    K = BUCKET_NUMBER
    bucket_value = jnp.arange(0, 1400, 7, dtype=jnp.float32).reshape(K, 2)
    meta = bucket_value @ params["w_bucket_t"] + params["b_bucket"]      # (K, n_embd)
    s = x @ params["w_ret_t"]                                            # (N,C,D,K)
    s = jnp.where(s > 0, s, NEG_SLOPE * s)
    s = s + s @ params["w_res_t"]
    m = jnp.max(s, axis=2, keepdims=True)
    e = jnp.exp(s - m)
    p = e / jnp.sum(e, axis=2, keepdims=True)
    return jnp.einsum("ncdk,km->ncdm", p, meta)


def init_params(key, n_embd):
    K = BUCKET_NUMBER
    k1, k2, k3, k4 = jax.random.split(key, 4)
    # PyTorch Linear stores weight as (out, in); we pass transposed (in, out).
    w_bucket = jax.random.normal(k1, (n_embd, 2), jnp.float32) * 0.1
    b_bucket = jax.random.normal(k2, (n_embd,), jnp.float32) * 0.1
    w_ret = jax.random.normal(k3, (K, 2), jnp.float32) * 0.1
    w_res = jax.random.normal(k4, (K, K), jnp.float32) * 0.1
    return {
        "w_bucket_t": w_bucket.T,                  # (2, n_embd)
        "b_bucket": b_bucket.reshape(1, n_embd),   # (1, n_embd)
        "w_ret_t": w_ret.T,                        # (2, 100)
        "w_res_t": w_res.T,                        # (100, 100)
    }


if __name__ == "__main__":
    key = jax.random.PRNGKey(0)
    kx, kp = jax.random.split(key)

    # Small shapes implied by the forward: x is (N, C, D, 2); D is the softmax axis.
    N, C, D, n_embd = 2, 4, 8, 32
    x = jax.random.normal(kx, (N, C, D, 2), jnp.float32)
    params = init_params(kp, n_embd)

    fwd = jax.jit(reward_embedding_forward)
    out = jax.block_until_ready(fwd(x, params))
    ref = jax.block_until_ready(reward_embedding_reference(x, params))

    assert out.shape == (N, C, D, n_embd)
    # pl.reciprocal(approx=True) changes softmax numerics slightly -> scale-aware check.
    err = float(jnp.max(jnp.abs(out - ref)))
    scale = float(jnp.max(jnp.abs(ref))) + 1e-6
    assert err / scale < 1e-2, f"mismatch vs reference: rel err {err / scale}"

    print("KERNEL_OK")
</pallas_src>

<mosaic_0001>
module attributes {stable_mosaic.version = 11 : i64} {
  func.func @reward_embedding_kernel(%arg0: i32, %arg1: memref<32x2xf32, #tpu.memory_space<vmem>>, %arg2: memref<2x128xf32, #tpu.memory_space<vmem>>, %arg3: memref<128x128xf32, #tpu.memory_space<vmem>>, %arg4: memref<128x32xf32, #tpu.memory_space<vmem>>, %arg5: memref<32x32xf32, #tpu.memory_space<vmem>>) attributes {dimension_semantics = [#tpu.dimension_semantics<parallel>], iteration_bounds = array<i64: 2>, scalar_prefetch = 0 : i64, scratch_operands = 0 : i64, tpu.core_type = #tpu.core_type<tc>, window_params = [{transform_indices = @transform_0, window_bounds = array<i64: 32, 2>}, {pipeline_mode = #tpu.pipeline_mode<synchronous>, transform_indices = @transform_1, window_bounds = array<i64: 2, 128>}, {pipeline_mode = #tpu.pipeline_mode<synchronous>, transform_indices = @transform_2, window_bounds = array<i64: 128, 128>}, {pipeline_mode = #tpu.pipeline_mode<synchronous>, transform_indices = @transform_3, window_bounds = array<i64: 128, 32>}, {transform_indices = @transform_4, window_bounds = array<i64: 32, 32>}]} {
    %c0 = arith.constant 0 : index
    %c0_0 = arith.constant 0 : index
    %0 = vector.load %arg1[%c0, %c0_0] : memref<32x2xf32, #tpu.memory_space<vmem>>, vector<32x1xf32>
    %c0_1 = arith.constant 0 : index
    %c1 = arith.constant 1 : index
    %1 = vector.load %arg1[%c0_1, %c1] : memref<32x2xf32, #tpu.memory_space<vmem>>, vector<32x1xf32>
    %c0_2 = arith.constant 0 : index
    %c0_3 = arith.constant 0 : index
    %2 = vector.load %arg2[%c0_2, %c0_3] : memref<2x128xf32, #tpu.memory_space<vmem>>, vector<1x128xf32>
    %3 = vector.broadcast %0 : vector<32x1xf32> to vector<32x128xf32>
    %4 = vector.broadcast %2 : vector<1x128xf32> to vector<32x128xf32>
    %5 = arith.mulf %3, %4 : vector<32x128xf32>
    %c1_4 = arith.constant 1 : index
    %c0_5 = arith.constant 0 : index
    %6 = vector.load %arg2[%c1_4, %c0_5] : memref<2x128xf32, #tpu.memory_space<vmem>>, vector<1x128xf32>
    %7 = vector.broadcast %1 : vector<32x1xf32> to vector<32x128xf32>
    %8 = vector.broadcast %6 : vector<1x128xf32> to vector<32x128xf32>
    %9 = arith.mulf %7, %8 : vector<32x128xf32>
    %10 = arith.addf %5, %9 : vector<32x128xf32>
    %cst = arith.constant 0.000000e+00 : f32
    %11 = vector.broadcast %cst : f32 to vector<32x128xf32>
    %12 = arith.cmpf ogt, %10, %11 : vector<32x128xf32>
    %cst_6 = arith.constant 0.00999999977 : f32
    %13 = vector.broadcast %cst_6 : f32 to vector<32x128xf32>
    %14 = arith.mulf %13, %10 : vector<32x128xf32>
    %15 = arith.select %12, %10, %14 : vector<32x128xi1>, vector<32x128xf32>
    %c0_7 = arith.constant 0 : index
    %c0_8 = arith.constant 0 : index
    %16 = vector.load %arg3[%c0_7, %c0_8] : memref<128x128xf32, #tpu.memory_space<vmem>>, vector<128x128xf32>
    %cst_9 = arith.constant dense<0.000000e+00> : vector<32x128xf32>
    %17 = tpu.matmul %15, %16, %cst_9 {dimension_numbers = #tpu.dot_dimension_numbers<[1], [0], [0], [1], [0, 0, 1, 1], [], []>} : vector<32x128xf32>, vector<128x128xf32>, vector<32x128xf32> -> vector<32x128xf32>
    %18 = arith.addf %15, %17 : vector<32x128xf32>
    %19 = vector.shape_cast %18 : vector<32x128xf32> to vector<4x8x128xf32>
    %cst_10 = arith.constant dense<0xFF800000> : vector<4x128xf32>
    %20 = vector.multi_reduction <maximumf>, %19, %cst_10 [1] : vector<4x8x128xf32> to vector<4x128xf32>
    %21 = vector.shape_cast %20 : vector<4x128xf32> to vector<4x1x128xf32>
    %22 = vector.broadcast %21 : vector<4x1x128xf32> to vector<4x8x128xf32>
    %23 = arith.subf %19, %22 : vector<4x8x128xf32>
    %24 = math.exp %23 : vector<4x8x128xf32>
    %cst_11 = arith.constant dense<0.000000e+00> : vector<4x128xf32>
    %25 = vector.multi_reduction <add>, %24, %cst_11 [1] : vector<4x8x128xf32> to vector<4x128xf32>
    %26 = vector.shape_cast %25 : vector<4x128xf32> to vector<4x1x128xf32>
    %27 = tpu.reciprocal %26 {approx = true} : vector<4x1x128xf32> -> vector<4x1x128xf32>
    %28 = vector.broadcast %27 : vector<4x1x128xf32> to vector<4x8x128xf32>
    %29 = arith.mulf %24, %28 : vector<4x8x128xf32>
    %30 = vector.shape_cast %29 : vector<4x8x128xf32> to vector<32x128xf32>
    %c0_12 = arith.constant 0 : index
    %c0_13 = arith.constant 0 : index
    %31 = vector.load %arg4[%c0_12, %c0_13] : memref<128x32xf32, #tpu.memory_space<vmem>>, vector<128x32xf32>
    %cst_14 = arith.constant dense<0.000000e+00> : vector<32x32xf32>
    %32 = tpu.matmul %30, %31, %cst_14 {dimension_numbers = #tpu.dot_dimension_numbers<[1], [0], [0], [1], [0, 0, 1, 1], [], []>} : vector<32x128xf32>, vector<128x32xf32>, vector<32x32xf32> -> vector<32x32xf32>
    %c0_15 = arith.constant 0 : index
    %c0_16 = arith.constant 0 : index
    %33 = vector.load %arg5[%c0_15, %c0_16] : memref<32x32xf32, #tpu.memory_space<vmem>>, vector<32x32xf32>
    tpu.vector_store %arg5[%c0_15, %c0_16], %32 {strides = array<i32>} : memref<32x32xf32, #tpu.memory_space<vmem>>, vector<32x32xf32>,
    return
  }
  func.func @transform_0(%arg0: i32) -> (i32, i32) {
    %c0_i32 = arith.constant 0 : i32
    %c0_i32_0 = arith.constant 0 : i32
    return %arg0, %c0_i32 : i32, i32
  }
  func.func @transform_1(%arg0: i32) -> (i32, i32) {
    %c0_i32 = arith.constant 0 : i32
    %c0_i32_0 = arith.constant 0 : i32
    %c0_i32_1 = arith.constant 0 : i32
    return %c0_i32, %c0_i32_0 : i32, i32
  }
  func.func @transform_2(%arg0: i32) -> (i32, i32) {
    %c0_i32 = arith.constant 0 : i32
    %c0_i32_0 = arith.constant 0 : i32
    %c0_i32_1 = arith.constant 0 : i32
    return %c0_i32, %c0_i32_0 : i32, i32
  }
  func.func @transform_3(%arg0: i32) -> (i32, i32) {
    %c0_i32 = arith.constant 0 : i32
    %c0_i32_0 = arith.constant 0 : i32
    %c0_i32_1 = arith.constant 0 : i32
    return %c0_i32, %c0_i32_0 : i32, i32
  }
  func.func @transform_4(%arg0: i32) -> (i32, i32) {
    %c0_i32 = arith.constant 0 : i32
    %c0_i32_0 = arith.constant 0 : i32
    return %arg0, %c0_i32 : i32, i32
  }
}

</mosaic_0001>

<llo_original>
// kernel: reward_embedding_forward.1
$region0: #{reward_embedding_forward.1}
  #allocation0 [shape = 'u32[]', space=smem, size = 0x4, offset = 0x4, fixed_abs, tag = 'smem constant byte address 0x4 - core index']
  #allocation1 [shape = 'u32[144,128]{1,0:T(1,128)}', space=vmem, size = 0x12000, scoped, tag = 'internal scratch']
  %s0 = inlined_call_operand.vmem [shape: f32[64,2], index: 0, kind: input, shape index: {}]
  %s1 = inlined_call_operand.vmem [shape: f32[2,128], index: 1, kind: input, shape index: {}]
  %s2 = inlined_call_operand.vmem [shape: f32[128,128], index: 2, kind: input, shape index: {}]
  %s3 = inlined_call_operand.vmem [shape: f32[128,32], index: 3, kind: input, shape index: {}]
  %s4 = inlined_call_operand.hbm [shape: f32[64,32], index: 4, kind: output, shape index: {}]
  %s5 = sld [smem:[#allocation0]]
  $region49: #{reward_embedding_forward.1} parent=0
    _
  %s7 = ssub.s32 1, %s5
  %s8 = scalar_select 0, %s7, %s5
  $region1: #{reward_embedding_forward.1} parent=0
    #allocation2 [shape = 'u8[32768]{0}', space=vmem, size = 0x8000, scoped, tag = 'output window, operand 0']
    #allocation3 [shape = 's32[2]{0}', space=sflag, size = 0x8, scoped, tag = 'scoped memory for reward_embedding_forward.1']
    %9 = vsyncpa [#allocation3], 0
    %s10 = scalar_lea.sflag [#allocation3], 1
    %11 = vsyncpa %s10, 0
    loop: start=0, step=1, limit=4
    $region2: #{reward_embedding_forward.1} parent=1 // loop_pre_header
      _
    $region3: #{reward_embedding_forward.1} parent=1 // loop_header
      %s13 = sphi 0, %s17
      %p14 = scmp.ge.s32.totalorder %s13, 4
      %s23 = sphi 0, %s25
      %s26 = sphi 0, %s23
      %s27 = sphi 0, %s26
      %s43 = sphi 0, %s27
      %s47 = sphi 0, %s47
      %s49 = sphi 0, %s47
      %s50 = sphi 0, %s49
      %s64 = sphi 0, %s50
      %s68 = sphi 0, %s68
      %s70 = sphi 0, %s68
      %s71 = sphi 0, %s70
      %s85 = sphi 0, %s71
      %s89 = sphi 0, %s89
      %s91 = sphi 0, %s89
      %s92 = sphi 0, %s91
      %s106 = sphi 0, %s92
      %s112 = sphi 0, %s114
      %s115 = sphi 0, %s112
      %s116 = sphi 0, %s115
      %s132 = sphi 0, %s116
    $region4: #{reward_embedding_forward.1} parent=1 // loop_header_branch
      %16 = sbr.rel (%p14) target = $region8
    $region5: #{reward_embedding_forward.1} parent=1 // loop_body
      %s18 = ssub.s32 %s13, 1
      %s19 = ssub.s32 %s13, 2
      %s20 = sadd.s32 %s13, 1
      %s21 = ssub.s32 %s13, %s20
      %p22 = scmp.eq.s32.totalorder %s21, 0
      %s24 = sadd.s32 %s23, 1
      %s25 = scalar_select %p22, %s23, %s24
      %p28 = pneg %p22
      %p29 = scmp.eq.s32.totalorder %s13, 1
      %p30 = por %p28, %p29
      %p31 = scmp.ne.s32.totalorder %s23, %s26
      %p32 = scmp.eq.s32.totalorder %s13, 0
      %p33 = por %p31, %p32
      %p34 = scmp.ne.s32.totalorder %s23, %s26
      %p35 = scmp.eq.s32.totalorder %s18, 1
      %p36 = por %p34, %p35
      %p37 = scmp.ne.s32.totalorder %s26, %s27
      %p38 = scmp.eq.s32.totalorder %s18, 0
      %p39 = por %p37, %p38
      %p40 = scmp.ne.s32.totalorder %s26, %s27
      %p41 = scmp.eq.s32.totalorder %s19, 1
      %p42 = por %p40, %p41
      %p44 = scmp.ne.s32.totalorder %s27, %s43
      %p45 = scmp.eq.s32.totalorder %s19, 0
      %p46 = por %p44, %p45
      %s48 = sadd.s32 %s47, 1
      %p51 = scmp.eq.s32.totalorder %s13, 1
      %p52 = scmp.ne.s32.totalorder %s47, %s49
      %p53 = scmp.eq.s32.totalorder %s13, 0
      %p54 = por %p52, %p53
      %p55 = scmp.ne.s32.totalorder %s47, %s49
      %p56 = scmp.eq.s32.totalorder %s18, 1
      %p57 = por %p55, %p56
      %p58 = scmp.ne.s32.totalorder %s49, %s50
      %p59 = scmp.eq.s32.totalorder %s18, 0
      %p60 = por %p58, %p59
      %p61 = scmp.ne.s32.totalorder %s49, %s50
      %p62 = scmp.eq.s32.totalorder %s19, 1
      %p63 = por %p61, %p62
      %p65 = scmp.ne.s32.totalorder %s50, %s64
      %p66 = scmp.eq.s32.totalorder %s19, 0
      %p67 = por %p65, %p66
      %s69 = sadd.s32 %s68, 1
      %p72 = scmp.eq.s32.totalorder %s13, 1
      %p73 = scmp.ne.s32.totalorder %s68, %s70
      %p74 = scmp.eq.s32.totalorder %s13, 0
      %p75 = por %p73, %p74
      %p76 = scmp.ne.s32.totalorder %s68, %s70
      %p77 = scmp.eq.s32.totalorder %s18, 1
      %p78 = por %p76, %p77
      %p79 = scmp.ne.s32.totalorder %s70, %s71
      %p80 = scmp.eq.s32.totalorder %s18, 0
      %p81 = por %p79, %p80
      %p82 = scmp.ne.s32.totalorder %s70, %s71
      %p83 = scmp.eq.s32.totalorder %s19, 1
      %p84 = por %p82, %p83
      %p86 = scmp.ne.s32.totalorder %s71, %s85
      %p87 = scmp.eq.s32.totalorder %s19, 0
      %p88 = por %p86, %p87
      %s90 = sadd.s32 %s89, 1
      %p93 = scmp.eq.s32.totalorder %s13, 1
      %p94 = scmp.ne.s32.totalorder %s89, %s91
      %p95 = scmp.eq.s32.totalorder %s13, 0
      %p96 = por %p94, %p95
      %p97 = scmp.ne.s32.totalorder %s89, %s91
      %p98 = scmp.eq.s32.totalorder %s18, 1
      %p99 = por %p97, %p98
      %p100 = scmp.ne.s32.totalorder %s91, %s92
      %p101 = scmp.eq.s32.totalorder %s18, 0
      %p102 = por %p100, %p101
      %p103 = scmp.ne.s32.totalorder %s91, %s92
      %p104 = scmp.eq.s32.totalorder %s19, 1
      %p105 = por %p103, %p104
      %p107 = scmp.ne.s32.totalorder %s92, %s106
      %p108 = scmp.eq.s32.totalorder %s19, 0
      %p109 = por %p107, %p108
      %s110 = ssub.s32 %s13, %s20
      %p111 = scmp.eq.s32.totalorder %s110, 0
      %s113 = sadd.s32 %s112, 1
      %s114 = scalar_select %p111, %s112, %s113
      %p117 = pneg %p111
      %p118 = scmp.eq.s32.totalorder %s13, 1
      %p119 = por %p117, %p118
      %p120 = scmp.ne.s32.totalorder %s112, %s115
      %p121 = scmp.eq.s32.totalorder %s13, 0
      %p122 = por %p120, %p121
      %p123 = scmp.ne.s32.totalorder %s112, %s115
      %p124 = scmp.eq.s32.totalorder %s18, 1
      %p125 = por %p123, %p124
      %p126 = scmp.ne.s32.totalorder %s115, %s116
      %p127 = scmp.eq.s32.totalorder %s18, 0
      %p128 = por %p126, %p127
      %p129 = scmp.ne.s32.totalorder %s115, %s116
      %p130 = scmp.eq.s32.totalorder %s19, 1
      %p131 = por %p129, %p130
      %p133 = scmp.ne.s32.totalorder %s116, %s132
      %p134 = scmp.eq.s32.totalorder %s19, 0
      %p135 = por %p133, %p134
      %p136 = scmp.le.s32.totalorder 1, %s13
      %p137 = scmp.lt.s32.totalorder %s13, 3
      %p138 = pnand %p136, %p137
      %p139 = pneg %p138
      // Predicated region
      $region9: #{reward_embedding_forward.1} parent=5 // pred_check
        _
      $region10: #{reward_embedding_forward.1} parent=5 // pred_check_branch
        %141 = sbr.rel (%p138) target = $region12
      $region11: #{reward_embedding_forward.1} parent=5 // pred_region
        %s142 = ssub.s32 %s13, 1
        // Predicated region
        $region13: #{reward_embedding_forward.1} parent=11 // pred_check
          %p143 = pneg %p60
        $region14: #{reward_embedding_forward.1} parent=11 // pred_check_branch
          %145 = sbr.rel (%p143) target = $region16
        $region15: #{reward_embedding_forward.1} parent=11 // pred_region
          _
        $region16: #{reward_embedding_forward.1} parent=11 // pred_fallthru
          _
        // Predicated region
        $region17: #{reward_embedding_forward.1} parent=11 // pred_check
          %p146 = pneg %p81
        $region18: #{reward_embedding_forward.1} parent=11 // pred_check_branch
          %148 = sbr.rel (%p146) target = $region20
        $region19: #{reward_embedding_forward.1} parent=11 // pred_region
          _
        $region20: #{reward_embedding_forward.1} parent=11 // pred_fallthru
          _
        // Predicated region
        $region21: #{reward_embedding_forward.1} parent=11 // pred_check
          %p149 = pneg %p102
        $region22: #{reward_embedding_forward.1} parent=11 // pred_check_branch
          %151 = sbr.rel (%p149) target = $region24
        $region23: #{reward_embedding_forward.1} parent=11 // pred_region
          _
        $region24: #{reward_embedding_forward.1} parent=11 // pred_fallthru
          _
      $region12: #{reward_embedding_forward.1} parent=5 // pred_fallthru
        _
      %p152 = scmp.lt.s32.totalorder %s13, 2
      // Predicated region
      $region25: #{reward_embedding_forward.1} parent=5 // pred_check
        %p153 = pneg %p152
      $region26: #{reward_embedding_forward.1} parent=5 // pred_check_branch
        %155 = sbr.rel (%p153) target = $region28
      $region27: #{reward_embedding_forward.1} parent=5 // pred_region
        // Predicated region
        $region29: #{reward_embedding_forward.1} parent=27 // pred_check
          %p156 = pneg %p33
        $region30: #{reward_embedding_forward.1} parent=27 // pred_check_branch
          %158 = sbr.rel (%p156) target = $region32
        $region31: #{reward_embedding_forward.1} parent=27 // pred_region
          %s159 = smul.u32 4, %s13
          %p160 = scmp.lt.s32.totalorder %s159, 7
          %s161 = scalar_select %p160, %s159, 7
          %s162 = smul.addr %s161, 8
          %s163 = scalar_lea.vmem %s0, %s162
          %s164 = smul.u32 4, %s13
        $region32: #{reward_embedding_forward.1} parent=27 // pred_fallthru
          _
      $region28: #{reward_embedding_forward.1} parent=5 // pred_fallthru
        _
      %p165 = scmp.le.s32.totalorder 1, %s13
      %p166 = scmp.lt.s32.totalorder %s13, 3
      %p167 = pnand %p165, %p166
      %p168 = pneg %p167
      // Predicated region
      $region33: #{reward_embedding_forward.1} parent=5 // pred_check
        _
      $region34: #{reward_embedding_forward.1} parent=5 // pred_check_branch
        %170 = sbr.rel (%p167) target = $region36
      $region35: #{reward_embedding_forward.1} parent=5 // pred_region
        %s171 = ssub.s32 %s13, 1
        %s172 = smul.u32 4, %s18
        %p173 = scmp.lt.s32.totalorder %s172, 7
        %s174 = scalar_select %p173, %s172, 7
        %s175 = smul.addr %s174, 8
        %s176 = scalar_lea.vmem %s0, %s175
        %p177 = pneg %p39
        %p178 = pneg %p36
        %p179 = pneg %p60
        %p180 = pneg %p57
        %p181 = pneg %p81
        %p182 = pneg %p78
        %p183 = pneg %p102
        %p184 = pneg %p99
        %p185 = pneg %p128
        %p186 = pneg %p125
        %s187 = sand.u32 %s115, 1
        %s188 = scalar_lea.sflag [#allocation3], %s187
        %s189 = sand.u32 %s115, 1
        %s190 = smul.addr %s189, 32
        %s191 = scalar_lea.vmem [#allocation2], %s190
        %s192 = smul.u32 4, %s18
        %p193 = scmp.lt.s32.totalorder %s192, 7
        %s194 = scalar_select %p193, %s192, 7
        %s195 = smul.addr %s194, 8
        %s196 = scalar_lea.vmem %s0, %s195
        %s197 = smul.u32 4, %s18
        %s198 = smul.u32 4, %s18
        %v199 = vld [vmem:[%s196] sm:$0xff]
        %v200 = vld [vmem:[%s196 + $0x8] sm:$0xff]
        %v201 = vld [vmem:[%s196 + $0x10] sm:$0xff]
        %v202 = vld [vmem:[%s196 + $0x18] sm:$0xff]
        %v203 = vld [vmem:[%s1] sm:$0x1]
        %205 = vset.pattern.permute.xlu0 0
        %206 = vperm.xlu0 %205, %v199
        %v207 = vpop.permute.xlu0 %206
        %210 = vset.pattern.permute.xlu0 0
        %211 = vperm.xlu0 %210, %v200
        %v212 = vpop.permute.xlu0 %211
        %215 = vset.pattern.permute.xlu0 0
        %216 = vperm.xlu0 %215, %v201
        %v217 = vpop.permute.xlu0 %216
        %220 = vset.pattern.permute.xlu0 0
        %221 = vperm.xlu0 %220, %v202
        %v222 = vpop.permute.xlu0 %221
        %v224 = vlaneseq
        %v225 = vshrl.u32 %v224, 7
        %v226 = vsub.s32 0, %v225
        %v227 = vrot.slane %v203, %v226
        %v228 = vmul.f32 %v207, %v227
        %v229 = vmul.f32 %v212, %v227
        %v230 = vmul.f32 %v217, %v227
        %v231 = vmul.f32 %v222, %v227
        %v232 = vld [vmem:[%s1 + $0x1] sm:$0x1]
        %233 = vset.pattern.permute.xlu0 1
        %234 = vperm.xlu0 %233, %v199
        %v235 = vpop.permute.xlu0 %234
        %237 = vset.pattern.permute.xlu0 1
        %238 = vperm.xlu0 %237, %v200
        %v239 = vpop.permute.xlu0 %238
        %241 = vset.pattern.permute.xlu0 1
        %242 = vperm.xlu0 %241, %v201
        %v243 = vpop.permute.xlu0 %242
        %245 = vset.pattern.permute.xlu0 1
        %246 = vperm.xlu0 %245, %v202
        %v247 = vpop.permute.xlu0 %246
        %v249 = vlaneseq
        %v250 = vshrl.u32 %v249, 7
        %v251 = vsub.s32 0, %v250
        %v252 = vrot.slane %v232, %v251
        %v253 = vmul.f32 %v235, %v252
        %v254 = vmul.f32 %v239, %v252
        %v255 = vmul.f32 %v243, %v252
        %v256 = vmul.f32 %v247, %v252
        %v257 = vadd.f32 %v228, %v253
        %v258 = vadd.f32 %v229, %v254
        %v259 = vadd.f32 %v230, %v255
        %v260 = vadd.f32 %v231, %v256
        %vm261 = vcmp.gt.f32.partialorder %v257, 0.0
        %vm262 = vcmp.gt.f32.partialorder %v258, 0.0
        %vm263 = vcmp.gt.f32.partialorder %v259, 0.0
        %vm264 = vcmp.gt.f32.partialorder %v260, 0.0
        %v265 = vmul.f32 %v257, 0.01
        %v266 = vmul.f32 %v258, 0.01
        %v267 = vmul.f32 %v259, 0.01
        %v268 = vmul.f32 %v260, 0.01
        %v269 = vsel %vm261, %v257, %v265
        %v270 = vsel %vm262, %v258, %v266
        %v271 = vsel %vm263, %v259, %v267
        %v272 = vsel %vm264, %v260, %v268
        %v273 = vld [vmem:[%s2] sm:$0xff]
        %v274 = vld [vmem:[%s2 + $0x8] sm:$0xff]
        %v275 = vld [vmem:[%s2 + $0x10] sm:$0xff]
        %v276 = vld [vmem:[%s2 + $0x18] sm:$0xff]
        %v277 = vld [vmem:[%s2 + $0x20] sm:$0xff]
        %v278 = vld [vmem:[%s2 + $0x28] sm:$0xff]
        %v279 = vld [vmem:[%s2 + $0x30] sm:$0xff]
        %v280 = vld [vmem:[%s2 + $0x38] sm:$0xff]
        %v281 = vld [vmem:[%s2 + $0x40] sm:$0xff]
        %v282 = vld [vmem:[%s2 + $0x48] sm:$0xff]
        %v283 = vld [vmem:[%s2 + $0x50] sm:$0xff]
        %v284 = vld [vmem:[%s2 + $0x58] sm:$0xff]
        %v285 = vld [vmem:[%s2 + $0x60] sm:$0xff]
        %v286 = vld [vmem:[%s2 + $0x68] sm:$0xff]
        %v287 = vld [vmem:[%s2 + $0x70] sm:$0xff]
        %v288 = vld [vmem:[%s2 + $0x78] sm:$0xff]
        %289 = vmatprep.subr.mxu0 0.0
        %290 = vmatpush1.msra.mxu0 %v273
        %291 = vmatprep.subr.mxu0 0.0
        %292 = vmatpush1.msra.mxu0 %v274
        %293 = vmatprep.subr.mxu0 0.0
        %294 = vmatpush1.msra.mxu0 %v275
        %295 = vmatprep.subr.mxu0 0.0
        %296 = vmatpush1.msra.mxu0 %v276
        %297 = vmatprep.subr.mxu0 0.0
        %298 = vmatpush1.msra.mxu0 %v277
        %299 = vmatprep.subr.mxu0 0.0
        %300 = vmatpush1.msra.mxu0 %v278
        %301 = vmatprep.subr.mxu0 0.0
        %302 = vmatpush1.msra.mxu0 %v279
        %303 = vmatprep.subr.mxu0 0.0
        %304 = vmatpush1.msra.mxu0 %v280
        %305 = vmatprep.subr.mxu0 0.0
        %306 = vmatpush1.msra.mxu0 %v281
        %307 = vmatprep.subr.mxu0 0.0
        %308 = vmatpush1.msra.mxu0 %v282
        %309 = vmatprep.subr.mxu0 0.0
        %310 = vmatpush1.msra.mxu0 %v283
        %311 = vmatprep.subr.mxu0 0.0
        %312 = vmatpush1.msra.mxu0 %v284
        %313 = vmatprep.subr.mxu0 0.0
        %314 = vmatpush1.msra.mxu0 %v285
        %315 = vmatprep.subr.mxu0 0.0
        %316 = vmatpush1.msra.mxu0 %v286
        %317 = vmatprep.subr.mxu0 0.0
        %318 = vmatpush1.msra.mxu0 %v287
        %319 = vmatprep.subr.mxu0 0.0
        %320 = vmatpush1.msra.mxu0 %v288
        %321 = vmatprep.subr.mxu0 0.0
        %322 = vmatpush1.msra.mxu0 0.0
        %323 = vmatprep.subr.mxu0 0.0
        %324 = vmatpush1.msra.mxu0 0.0
        %325 = vmatprep.subr.mxu0 0.0
        %326 = vmatpush1.msra.mxu0 0.0
        %327 = vmatprep.subr.mxu0 0.0
        %328 = vmatpush1.msra.mxu0 0.0
        %329 = vmatprep.subr.mxu0 0.0
        %330 = vmatpush1.msra.mxu0 0.0
        %331 = vmatprep.subr.mxu0 0.0
        %332 = vmatpush1.msra.mxu0 0.0
        %333 = vmatprep.subr.mxu0 0.0
        %334 = vmatpush1.msra.mxu0 0.0
        %335 = vmatprep.subr.mxu0 0.0
        %336 = vmatpush1.msra.mxu0 0.0
        %337 = vmatprep.subr.mxu0 0.0
        %338 = vmatpush1.msra.mxu0 0.0
        %339 = vmatprep.subr.mxu0 0.0
        %340 = vmatpush1.msra.mxu0 0.0
        %341 = vmatprep.subr.mxu0 0.0
        %342 = vmatpush1.msra.mxu0 0.0
        %343 = vmatprep.subr.mxu0 0.0
        %344 = vmatpush1.msra.mxu0 0.0
        %345 = vmatprep.subr.mxu0 0.0
        %346 = vmatpush1.msra.mxu0 0.0
        %347 = vmatprep.subr.mxu0 0.0
        %348 = vmatpush1.msra.mxu0 0.0
        %349 = vmatprep.subr.mxu0 0.0
        %350 = vmatpush1.msra.mxu0 0.0
        %351 = vmatprep.subr.mxu0 0.0
        %352 = vmatpush1.msra.mxu0 0.0
        %353 = vmatprep.mubr.f32.mxu0 0.0
        %354 = vmatmul.mubr.f32.gmra.mrb[0].mxu0 %v269
        %v355 = vpop.f32.mrb[0].mxu0
        %v356 = vadd.f32 0.0, %v355
        %v357 = vpop.f32.mrb[0].mxu0
        %358 = vmatprep.mubr.f32.mxu0 0.0
        %359 = vmatmul.mubr.f32.gmra.mrb[0].mxu0 %v270
        %v360 = vpop.f32.mrb[0].mxu0
        %v361 = vadd.f32 0.0, %v360
        %v362 = vpop.f32.mrb[0].mxu0
        %363 = vmatprep.mubr.f32.mxu0 0.0
        %364 = vmatmul.mubr.f32.gmra.mrb[0].mxu0 %v271
        %v365 = vpop.f32.mrb[0].mxu0
        %v366 = vadd.f32 0.0, %v365
        %v367 = vpop.f32.mrb[0].mxu0
        %368 = vmatprep.mubr.f32.mxu0 0.0
        %369 = vmatmul.mubr.f32.gmra.mrb[0].mxu0 %v272
        %v370 = vpop.f32.mrb[0].mxu0
        %v371 = vadd.f32 0.0, %v370
        %v372 = vpop.f32.mrb[0].mxu0
        %373 = vdwg.mxu0
        %v374 = vadd.f32 %v269, %v356
        %v375 = vadd.f32 %v270, %v361
        %v376 = vadd.f32 %v271, %v366
        %v377 = vadd.f32 %v272, %v371
        %v378 = vrot.slane %v374, 4
        %v379 = vmax.f32 %v374, %v378
        %v380 = vrot.slane %v379, 2
        %v381 = vmax.f32 %v379, %v380
        %v382 = vrot.slane %v381, 1
        %v383 = vmax.f32 %v381, %v382
        %v384 = vrot.slane %v375, 4
        %v385 = vmax.f32 %v375, %v384
        %v386 = vrot.slane %v385, 2
        %v387 = vmax.f32 %v385, %v386
        %v388 = vrot.slane %v387, 1
        %v389 = vmax.f32 %v387, %v388
        %v390 = vrot.slane %v376, 4
        %v391 = vmax.f32 %v376, %v390
        %v392 = vrot.slane %v391, 2
        %v393 = vmax.f32 %v391, %v392
        %v394 = vrot.slane %v393, 1
        %v395 = vmax.f32 %v393, %v394
        %v396 = vrot.slane %v377, 4
        %v397 = vmax.f32 %v377, %v396
        %v398 = vrot.slane %v397, 2
        %v399 = vmax.f32 %v397, %v398
        %v400 = vrot.slane %v399, 1
        %v401 = vmax.f32 %v399, %v400
        %v402 = vsub.f32 %v374, %v383
        %v403 = vsub.f32 %v375, %v389
        %v404 = vsub.f32 %v376, %v395
        %v405 = vsub.f32 %v377, %v401
        %v406 = vmul.f32 %v402, 1.442695
        %v407 = vpow.pop %v406
        %v408 = vmul.f32 %v403, 1.442695
        %v409 = vpow.pop %v408
        %v410 = vmul.f32 %v404, 1.442695
        %v411 = vpow.pop %v410
        %v412 = vmul.f32 %v405, 1.442695
        %v413 = vpow.pop %v412
        %v414 = vrot.slane %v407, 4
        %v415 = vadd.f32 %v407, %v414
        %v416 = vrot.slane %v415, 2
        %v417 = vadd.f32 %v415, %v416
        %v418 = vrot.slane %v417, 1
        %v419 = vadd.f32 %v417, %v418
        %v420 = vrot.slane %v409, 4
        %v421 = vadd.f32 %v409, %v420
        %v422 = vrot.slane %v421, 2
        %v423 = vadd.f32 %v421, %v422
        %v424 = vrot.slane %v423, 1
        %v425 = vadd.f32 %v423, %v424
        %v426 = vrot.slane %v411, 4
        %v427 = vadd.f32 %v411, %v426
        %v428 = vrot.slane %v427, 2
        %v429 = vadd.f32 %v427, %v428
        %v430 = vrot.slane %v429, 1
        %v431 = vadd.f32 %v429, %v430
        %v432 = vrot.slane %v413, 4
        %v433 = vadd.f32 %v413, %v432
        %v434 = vrot.slane %v433, 2
        %v435 = vadd.f32 %v433, %v434
        %v436 = vrot.slane %v435, 1
        %v437 = vadd.f32 %v435, %v436
        %v438 = vrcp.pop %v419
        %v439 = vrcp.pop %v425
        %v440 = vrcp.pop %v431
        %v441 = vrcp.pop %v437
        %v442 = vmul.f32 %v407, %v438
        %v443 = vmul.f32 %v409, %v439
        %v444 = vmul.f32 %v411, %v440
        %v445 = vmul.f32 %v413, %v441
        %v446 = vld [vmem:[%s3] sm:$0xff]
        %v447 = vld [vmem:[%s3 + $0x8] sm:$0xff]
        %v448 = vld [vmem:[%s3 + $0x10] sm:$0xff]
        %v449 = vld [vmem:[%s3 + $0x18] sm:$0xff]
        %v450 = vld [vmem:[%s3 + $0x20] sm:$0xff]
        %v451 = vld [vmem:[%s3 + $0x28] sm:$0xff]
        %v452 = vld [vmem:[%s3 + $0x30] sm:$0xff]
        %v453 = vld [vmem:[%s3 + $0x38] sm:$0xff]
        %v454 = vld [vmem:[%s3 + $0x40] sm:$0xff]
        %v455 = vld [vmem:[%s3 + $0x48] sm:$0xff]
        %v456 = vld [vmem:[%s3 + $0x50] sm:$0xff]
        %v457 = vld [vmem:[%s3 + $0x58] sm:$0xff]
        %v458 = vld [vmem:[%s3 + $0x60] sm:$0xff]
        %v459 = vld [vmem:[%s3 + $0x68] sm:$0xff]
        %v460 = vld [vmem:[%s3 + $0x70] sm:$0xff]
        %v461 = vld [vmem:[%s3 + $0x78] sm:$0xff]
        %462 = vmatprep.subr.mxu0 0.0
        %463 = vmatpush1.msra.mxu0 %v446
        %464 = vmatprep.subr.mxu0 0.0
        %465 = vmatpush1.msra.mxu0 %v447
        %466 = vmatprep.subr.mxu0 0.0
        %467 = vmatpush1.msra.mxu0 %v448
        %468 = vmatprep.subr.mxu0 0.0
        %469 = vmatpush1.msra.mxu0 %v449
        %470 = vmatprep.subr.mxu0 0.0
        %471 = vmatpush1.msra.mxu0 %v450
        %472 = vmatprep.subr.mxu0 0.0
        %473 = vmatpush1.msra.mxu0 %v451
        %474 = vmatprep.subr.mxu0 0.0
        %475 = vmatpush1.msra.mxu0 %v452
        %476 = vmatprep.subr.mxu0 0.0
        %477 = vmatpush1.msra.mxu0 %v453
        %478 = vmatprep.subr.mxu0 0.0
        %479 = vmatpush1.msra.mxu0 %v454
        %480 = vmatprep.subr.mxu0 0.0
        %481 = vmatpush1.msra.mxu0 %v455
        %482 = vmatprep.subr.mxu0 0.0
        %483 = vmatpush1.msra.mxu0 %v456
        %484 = vmatprep.subr.mxu0 0.0
        %485 = vmatpush1.msra.mxu0 %v457
        %486 = vmatprep.subr.mxu0 0.0
        %487 = vmatpush1.msra.mxu0 %v458
        %488 = vmatprep.subr.mxu0 0.0
        %489 = vmatpush1.msra.mxu0 %v459
        %490 = vmatprep.subr.mxu0 0.0
        %491 = vmatpush1.msra.mxu0 %v460
        %492 = vmatprep.subr.mxu0 0.0
        %493 = vmatpush1.msra.mxu0 %v461
        %494 = vmatprep.subr.mxu0 0.0
        %495 = vmatpush1.msra.mxu0 0.0
        %496 = vmatprep.subr.mxu0 0.0
        %497 = vmatpush1.msra.mxu0 0.0
        %498 = vmatprep.subr.mxu0 0.0
        %499 = vmatpush1.msra.mxu0 0.0
        %500 = vmatprep.subr.mxu0 0.0
        %501 = vmatpush1.msra.mxu0 0.0
        %502 = vmatprep.subr.mxu0 0.0
        %503 = vmatpush1.msra.mxu0 0.0
        %504 = vmatprep.subr.mxu0 0.0
        %505 = vmatpush1.msra.mxu0 0.0
        %506 = vmatprep.subr.mxu0 0.0
        %507 = vmatpush1.msra.mxu0 0.0
        %508 = vmatprep.subr.mxu0 0.0
        %509 = vmatpush1.msra.mxu0 0.0
        %510 = vmatprep.subr.mxu0 0.0
        %511 = vmatpush1.msra.mxu0 0.0
        %512 = vmatprep.subr.mxu0 0.0
        %513 = vmatpush1.msra.mxu0 0.0
        %514 = vmatprep.subr.mxu0 0.0
        %515 = vmatpush1.msra.mxu0 0.0
        %516 = vmatprep.subr.mxu0 0.0
        %517 = vmatpush1.msra.mxu0 0.0
        %518 = vmatprep.subr.mxu0 0.0
        %519 = vmatpush1.msra.mxu0 0.0
        %520 = vmatprep.subr.mxu0 0.0
        %521 = vmatpush1.msra.mxu0 0.0
        %522 = vmatprep.subr.mxu0 0.0
        %523 = vmatpush1.msra.mxu0 0.0
        %524 = vmatprep.subr.mxu0 0.0
        %525 = vmatpush1.msra.mxu0 0.0
        %526 = vmatprep.mubr.f32.mxu0 0.0
        %527 = vmatmul.mubr.f32.gmra.mrb[0].mxu0 %v442
        %v528 = vpop.f32.mrb[0].mxu0
        %v529 = vadd.f32 0.0, %v528
        %v530 = vpop.f32.mrb[0].mxu0
        %531 = vmatprep.mubr.f32.mxu0 0.0
        %532 = vmatmul.mubr.f32.gmra.mrb[0].mxu0 %v443
        %v533 = vpop.f32.mrb[0].mxu0
        %v534 = vadd.f32 0.0, %v533
        %v535 = vpop.f32.mrb[0].mxu0
        %536 = vmatprep.mubr.f32.mxu0 0.0
        %537 = vmatmul.mubr.f32.gmra.mrb[0].mxu0 %v444
        %v538 = vpop.f32.mrb[0].mxu0
        %v539 = vadd.f32 0.0, %v538
        %v540 = vpop.f32.mrb[0].mxu0
        %541 = vmatprep.mubr.f32.mxu0 0.0
        %542 = vmatmul.mubr.f32.gmra.mrb[0].mxu0 %v445
        %v543 = vpop.f32.mrb[0].mxu0
        %v544 = vadd.f32 0.0, %v543
        %v545 = vpop.f32.mrb[0].mxu0
        %546 = vdwg.mxu0
        %vm547 = vcmask 261120
        %548 = vst.msk [vmem:[%s191] sm:$0xff] %vm547, %v529
        %549 = vst.msk [vmem:[%s191 + $0x8] sm:$0xff] %vm547, %v534
        %550 = vst.msk [vmem:[%s191 + $0x10] sm:$0xff] %vm547, %v539
        %551 = vst.msk [vmem:[%s191 + $0x18] sm:$0xff] %vm547, %v544
        %s552 = sand.u32 %s115, 1
        %s553 = scalar_lea.sflag [#allocation3], %s552
        %s554 = sand.u32 %s115, 1
        %s555 = smul.addr %s554, 32
        %s556 = scalar_lea.vmem [#allocation2], %s555
        // Predicated region
        $region37: #{reward_embedding_forward.1} parent=35 // pred_check
          %p557 = pneg %p125
        $region38: #{reward_embedding_forward.1} parent=35 // pred_check_branch
          %559 = sbr.rel (%p557) target = $region40
        $region39: #{reward_embedding_forward.1} parent=35 // pred_region
          %s560 = smul.u32 4, %s18
          %s562 = ssub.s32 512, 512
          %563 = vsyncadd %s553, %s562
          %s564 = smul.addr %s560, 128
          %s565 = scalar_lea.hbm %s4, %s564
          %s566 = sshll.u32 %s556, 4
          %s567 = int_to_ptr.vmem [resolvable:$true] %s566
          %572 = dma.vmem_to_hbm [thread:$0]  %s567, 512, %s565, %s553, 128, 128, 8
        $region40: #{reward_embedding_forward.1} parent=35 // pred_fallthru
          _
      $region36: #{reward_embedding_forward.1} parent=5 // pred_fallthru
        _
      %p573 = scmp.le.s32.totalorder 2, %s13
      // Predicated region
      $region41: #{reward_embedding_forward.1} parent=5 // pred_check
        %p574 = pneg %p573
      $region42: #{reward_embedding_forward.1} parent=5 // pred_check_branch
        %576 = sbr.rel (%p574) target = $region44
      $region43: #{reward_embedding_forward.1} parent=5 // pred_region
        %s577 = ssub.s32 %s13, 2
        // Predicated region
        $region45: #{reward_embedding_forward.1} parent=43 // pred_check
          %p578 = pneg %p131
        $region46: #{reward_embedding_forward.1} parent=43 // pred_check_branch
          %580 = sbr.rel (%p578) target = $region48
        $region47: #{reward_embedding_forward.1} parent=43 // pred_region
          %s581 = sand.u32 %s116, 1
          %s582 = scalar_lea.sflag [#allocation3], %s581
          %s583 = sand.u32 %s116, 1
          %s584 = smul.addr %s583, 32
          %s585 = scalar_lea.vmem [#allocation2], %s584
          %586 = dma.done %s582, 512
        $region48: #{reward_embedding_forward.1} parent=43 // pred_fallthru
          _
      $region44: #{reward_embedding_forward.1} parent=5 // pred_fallthru
        _
    $region6: #{reward_embedding_forward.1} parent=1 // loop_footer
      %s17 = sadd.s32 1, %s13
    $region7: #{reward_embedding_forward.1} parent=1 // loop_footer_branch
      %12 = sbr.rel target = $region3
    $region8: #{reward_embedding_forward.1} parent=1 // loop_exit
      _
    %587 = vsyncpa [#allocation3], 1
    %s588 = scalar_lea.sflag [#allocation3], 1
    %589 = vsyncpa %s588, 1

</llo_original>
